<compile_context>
chip_gen: v7x
topology: tpu7x:2x2x1
jax: 0.10.0
libtpu: 0.0.40
codegen_flags: <defaults>
</compile_context>

<pallas_src>
import functools

import jax
import jax.numpy as jnp
from jax.experimental import pallas as pl
from jax.experimental.pallas import tpu as pltpu


def _round_up(x, m):
    return (x + m - 1) // m * m


def _pick_tile(padded_dim, max_tile, min_blocks=1):
    """Largest multiple of 128 (<= max_tile) dividing padded_dim, preferring a
    choice that yields at least `min_blocks` blocks (no extra padding)."""
    cands = [t for t in range(128, min(max_tile, padded_dim) + 1, 128)
             if padded_dim % t == 0]
    pref = [t for t in cands if padded_dim // t >= min_blocks]
    return max(pref or cands)


def graphconv_kernel(kidx_ref, cnt_ref, norm_dst_ref, adj_ref, feat_src_ref,
                     feat_dst_ref, out_ref, acc_ref):
    i = pl.program_id(0)
    k = pl.program_id(2)

    @pl.when(k == 0)
    def _():
        acc_ref[...] = jnp.zeros_like(acc_ref)

    # Only accumulate for adjacency tiles that actually contain edges.  The
    # compacted index_map repeats the last nonzero tile index for the trailing
    # (empty) k steps, so their DMA is skipped and this branch does nothing.
    @pl.when(k < cnt_ref[i])
    def _():
        acc_ref[...] += jnp.dot(adj_ref[...], feat_src_ref[...],
                                preferred_element_type=jnp.float32)

    @pl.when(k == pl.num_programs(2) - 1)
    def _():
        rst = (feat_dst_ref[...] + acc_ref[...]) * norm_dst_ref[...]
        out_ref[...] = rst.astype(out_ref.dtype)


@functools.partial(jax.jit, static_argnames=("block_node", "block_feat"))
def graph_conv(adj, feat, *, block_node=512, block_feat=512):
    """GraphConv(norm='both', activation=None) forward pass (LightGCN variant)."""
    N, F = feat.shape
    assert adj.shape == (N, N)

    # Degree-based norms: tiny [N] reductions hoisted out of the tiled kernel.
    out_deg = jnp.sum(adj, axis=0)                        # per source node
    in_deg = jnp.sum(adj, axis=1)                         # per destination node
    norm_src = jax.lax.rsqrt(jnp.maximum(out_deg, 1.0) + 1.0)
    norm_dst = jax.lax.rsqrt(jnp.maximum(in_deg, 1.0) + 1.0)

    # Lane-dense, MXU-aligned tile sizes.  Prefer >=2 dst-row tiles (v7x
    # megacore); the feature tile covers the whole padded F when it fits.
    Np = _round_up(N, 128)
    Fp = _round_up(F, 128)
    tm = tk = _pick_tile(Np, block_node, min_blocks=2)
    tn = _pick_tile(Fp, block_feat, min_blocks=1)
    gi, gj, gk = Np // tm, Fp // tn, Np // tk

    # Zero-padding is exact for this linear op; padded norm/feat rows are zero
    # or unused and the padded output rows are sliced off.
    adj_p = jnp.pad(adj.astype(jnp.bfloat16), ((0, Np - N), (0, Np - N)))
    # norm_src folded into the src features: one f32 scale, one bf16 cast.
    feat_src_p = jnp.pad((feat * norm_src[:, None]).astype(jnp.bfloat16),
                         ((0, Np - N), (0, Fp - F)))
    feat_dst_p = jnp.pad(feat, ((0, Np - N), (0, Fp - F)))
    norm_dst_p = jnp.pad(norm_dst, (0, Np - N), constant_values=1.0)[:, None]

    # Block-sparse schedule: per dst-row tile i, the compacted list of nonzero
    # adjacency tile indices along k (trailing entries repeat the last valid
    # index -> same block index -> pipeline skips the re-fetch).
    occ = (adj_p.reshape(gi, tm, gk, tk) != 0).any(axis=(1, 3))       # [gi, gk]
    cnt = occ.sum(axis=1).astype(jnp.int32)                           # [gi]
    order = jnp.argsort(jnp.logical_not(occ), axis=1, stable=True)    # nz first
    clip = jnp.minimum(jnp.arange(gk, dtype=jnp.int32)[None, :],
                       jnp.maximum(cnt[:, None] - 1, 0))
    kidx = jnp.take_along_axis(order, clip, axis=1).astype(jnp.int32)  # [gi, gk]

    out_p = pl.pallas_call(
        graphconv_kernel,
        out_shape=jax.ShapeDtypeStruct((Np, Fp), feat.dtype),
        grid_spec=pltpu.PrefetchScalarGridSpec(
            num_scalar_prefetch=2,
            grid=(gi, gj, gk),
            in_specs=[
                pl.BlockSpec((tm, 1), lambda i, j, k, ki, ct: (i, 0)),    # norm_dst
                pl.BlockSpec((tm, tk),
                             lambda i, j, k, ki, ct: (i, ki[i, k])),      # adj (bf16)
                pl.BlockSpec((tk, tn),
                             lambda i, j, k, ki, ct: (ki[i, k], j)),      # feat_src (bf16, pre-scaled)
                pl.BlockSpec((tm, tn), lambda i, j, k, ki, ct: (i, j)),   # feat_dst (f32)
            ],
            out_specs=pl.BlockSpec((tm, tn), lambda i, j, k, ki, ct: (i, j)),
            scratch_shapes=[pltpu.VMEM((tm, tn), jnp.float32)],
        ),
        compiler_params=pltpu.CompilerParams(
            dimension_semantics=("parallel", "parallel", "arbitrary"),
            vmem_limit_bytes=48 * 1024 * 1024,
        ),
    )(kidx, cnt, norm_dst_p, adj_p, feat_src_p, feat_dst_p)

    return out_p[:N, :F]


def graph_conv_ref(adj, feat):
    """Pure-JAX f32 reference for correctness checking (matches the module)."""
    out_deg = jnp.sum(adj, axis=0)
    in_deg = jnp.sum(adj, axis=1)
    norm_src = (jnp.maximum(out_deg, 1.0) + 1.0) ** -0.5
    norm_dst = (jnp.maximum(in_deg, 1.0) + 1.0) ** -0.5
    h_neigh = adj @ (feat * norm_src[:, None])
    return (feat + h_neigh) * norm_dst[:, None]


if __name__ == "__main__":
    N, F = 320, 96   # small graph: 3 node tiles (128) x 1 feature tile (128)
    key = jax.random.PRNGKey(0)
    k_adj, k_feat = jax.random.split(key)

    # Deterministic block-structured sparse graph (~lower-block-triangular at
    # 128-node granularity) so the block-sparse k-axis compaction is exercised
    # (per-row-tile nonzero counts become [1, 2, 3]).
    dense = jax.random.bernoulli(k_adj, p=0.08, shape=(N, N)).astype(jnp.float32)
    blk = jnp.arange(N) // 128
    adj = dense * (blk[:, None] >= blk[None, :]).astype(jnp.float32)
    feat = jax.random.normal(k_feat, (N, F), dtype=jnp.float32)

    out = graph_conv(adj, feat)
    out = jax.block_until_ready(out)

    ref = graph_conv_ref(adj, feat)
    assert out.shape == (N, F)
    # bf16 MXU operands (adj exact 0/1, feat rounded once) with f32 accumulation.
    err = float(jnp.max(jnp.abs(out - ref)))
    assert jnp.allclose(out, ref, atol=3e-2, rtol=3e-2), err

    print("KERNEL_OK")
</pallas_src>

<mosaic_0001>
module attributes {stable_mosaic.version = 11 : i64} {
  func.func @graphconv_kernel(%arg0: i32, %arg1: i32, %arg2: i32, %arg3: memref<3x3xi32, #tpu.memory_space<smem>>, %arg4: memref<3xi32, #tpu.memory_space<smem>>, %arg5: memref<128x1xf32, #tpu.memory_space<vmem>>, %arg6: memref<128x128xbf16, #tpu.memory_space<vmem>>, %arg7: memref<128x128xbf16, #tpu.memory_space<vmem>>, %arg8: memref<128x128xf32, #tpu.memory_space<vmem>>, %arg9: memref<128x128xf32, #tpu.memory_space<vmem>>, %arg10: memref<128x128xf32, #tpu.memory_space<vmem>>) attributes {dimension_semantics = [#tpu.dimension_semantics<parallel>, #tpu.dimension_semantics<parallel>, #tpu.dimension_semantics<arbitrary>], iteration_bounds = array<i64: 3, 1, 3>, scalar_prefetch = 2 : i64, scratch_operands = 1 : i64, tpu.core_type = #tpu.core_type<tc>, window_params = [{transform_indices = @transform_0, window_bounds = array<i64: 128, 1>}, {transform_indices = @transform_1, window_bounds = array<i64: 128, 128>}, {transform_indices = @transform_2, window_bounds = array<i64: 128, 128>}, {transform_indices = @transform_3, window_bounds = array<i64: 128, 128>}, {transform_indices = @transform_4, window_bounds = array<i64: 128, 128>}]} {
    %c0_i32 = arith.constant 0 : i32
    %0 = arith.cmpi eq, %arg2, %c0_i32 : i32
    %1 = arith.extui %0 : i1 to i32
    %c0_i32_0 = arith.constant 0 : i32
    %2 = arith.cmpi ne, %1, %c0_i32_0 : i32
    scf.if %2 {
      %cst = arith.constant 0.000000e+00 : f32
      %11 = vector.broadcast %cst : f32 to vector<128x128xf32>
      %c0 = arith.constant 0 : index
      %c0_3 = arith.constant 0 : index
      %12 = vector.load %arg10[%c0, %c0_3] : memref<128x128xf32, #tpu.memory_space<vmem>>, vector<128x128xf32>
      tpu.vector_store %arg10[%c0, %c0_3], %11 {strides = array<i32>} : memref<128x128xf32, #tpu.memory_space<vmem>>, vector<128x128xf32>,
    } else {
    }
    %3 = arith.index_cast %arg0 : i32 to index
    %4 = memref.load %arg4[%3] : memref<3xi32, #tpu.memory_space<smem>>
    %5 = arith.cmpi slt, %arg2, %4 : i32
    %6 = arith.extui %5 : i1 to i32
    %c0_i32_1 = arith.constant 0 : i32
    %7 = arith.cmpi ne, %6, %c0_i32_1 : i32
    scf.if %7 {
      %c0 = arith.constant 0 : index
      %c0_3 = arith.constant 0 : index
      %11 = vector.load %arg10[%c0, %c0_3] : memref<128x128xf32, #tpu.memory_space<vmem>>, vector<128x128xf32>
      %c0_4 = arith.constant 0 : index
      %c0_5 = arith.constant 0 : index
      %12 = vector.load %arg6[%c0_4, %c0_5] : memref<128x128xbf16, #tpu.memory_space<vmem>>, vector<128x128xbf16>
      %c0_6 = arith.constant 0 : index
      %c0_7 = arith.constant 0 : index
      %13 = vector.load %arg7[%c0_6, %c0_7] : memref<128x128xbf16, #tpu.memory_space<vmem>>, vector<128x128xbf16>
      %cst = arith.constant dense<0.000000e+00> : vector<128x128xf32>
      %14 = tpu.matmul %12, %13, %cst {dimension_numbers = #tpu.dot_dimension_numbers<[1], [0], [0], [1], [0, 0, 1, 1], [], []>} : vector<128x128xbf16>, vector<128x128xbf16>, vector<128x128xf32> -> vector<128x128xf32>
      %15 = arith.addf %11, %14 : vector<128x128xf32>
      %c0_8 = arith.constant 0 : index
      %c0_9 = arith.constant 0 : index
      %16 = vector.load %arg10[%c0_8, %c0_9] : memref<128x128xf32, #tpu.memory_space<vmem>>, vector<128x128xf32>
      tpu.vector_store %arg10[%c0_8, %c0_9], %15 {strides = array<i32>} : memref<128x128xf32, #tpu.memory_space<vmem>>, vector<128x128xf32>,
    } else {
    }
    %c2_i32 = arith.constant 2 : i32
    %8 = arith.cmpi eq, %arg2, %c2_i32 : i32
    %9 = arith.extui %8 : i1 to i32
    %c0_i32_2 = arith.constant 0 : i32
    %10 = arith.cmpi ne, %9, %c0_i32_2 : i32
    scf.if %10 {
      %c0 = arith.constant 0 : index
      %c0_3 = arith.constant 0 : index
      %11 = vector.load %arg8[%c0, %c0_3] : memref<128x128xf32, #tpu.memory_space<vmem>>, vector<128x128xf32>
      %c0_4 = arith.constant 0 : index
      %c0_5 = arith.constant 0 : index
      %12 = vector.load %arg10[%c0_4, %c0_5] : memref<128x128xf32, #tpu.memory_space<vmem>>, vector<128x128xf32>
      %13 = arith.addf %11, %12 : vector<128x128xf32>
      %c0_6 = arith.constant 0 : index
      %c0_7 = arith.constant 0 : index
      %14 = vector.load %arg5[%c0_6, %c0_7] : memref<128x1xf32, #tpu.memory_space<vmem>>, vector<128x1xf32>
      %15 = vector.broadcast %14 : vector<128x1xf32> to vector<128x128xf32>
      %16 = arith.mulf %13, %15 : vector<128x128xf32>
      %c0_8 = arith.constant 0 : index
      %c0_9 = arith.constant 0 : index
      %17 = vector.load %arg9[%c0_8, %c0_9] : memref<128x128xf32, #tpu.memory_space<vmem>>, vector<128x128xf32>
      tpu.vector_store %arg9[%c0_8, %c0_9], %16 {strides = array<i32>} : memref<128x128xf32, #tpu.memory_space<vmem>>, vector<128x128xf32>,
    } else {
    }
    return
  }
  func.func @transform_0(%arg0: i32, %arg1: i32, %arg2: i32, %arg3: memref<3x3xi32, #tpu.memory_space<smem>>, %arg4: memref<3xi32, #tpu.memory_space<smem>>) -> (i32, i32) {
    %c0_i32 = arith.constant 0 : i32
    %c0_i32_0 = arith.constant 0 : i32
    return %arg0, %c0_i32 : i32, i32
  }
  func.func @transform_1(%arg0: i32, %arg1: i32, %arg2: i32, %arg3: memref<3x3xi32, #tpu.memory_space<smem>>, %arg4: memref<3xi32, #tpu.memory_space<smem>>) -> (i32, i32) {
    %0 = arith.index_cast %arg0 : i32 to index
    %1 = arith.index_cast %arg2 : i32 to index
    %2 = memref.load %arg3[%0, %1] : memref<3x3xi32, #tpu.memory_space<smem>>
    %c0_i32 = arith.constant 0 : i32
    return %arg0, %2 : i32, i32
  }
  func.func @transform_2(%arg0: i32, %arg1: i32, %arg2: i32, %arg3: memref<3x3xi32, #tpu.memory_space<smem>>, %arg4: memref<3xi32, #tpu.memory_space<smem>>) -> (i32, i32) {
    %0 = arith.index_cast %arg0 : i32 to index
    %1 = arith.index_cast %arg2 : i32 to index
    %2 = memref.load %arg3[%0, %1] : memref<3x3xi32, #tpu.memory_space<smem>>
    %c0_i32 = arith.constant 0 : i32
    return %2, %arg1 : i32, i32
  }
  func.func @transform_3(%arg0: i32, %arg1: i32, %arg2: i32, %arg3: memref<3x3xi32, #tpu.memory_space<smem>>, %arg4: memref<3xi32, #tpu.memory_space<smem>>) -> (i32, i32) {
    %c0_i32 = arith.constant 0 : i32
    return %arg0, %arg1 : i32, i32
  }
  func.func @transform_4(%arg0: i32, %arg1: i32, %arg2: i32, %arg3: memref<3x3xi32, #tpu.memory_space<smem>>, %arg4: memref<3xi32, #tpu.memory_space<smem>>) -> (i32, i32) {
    %c0_i32 = arith.constant 0 : i32
    return %arg0, %arg1 : i32, i32
  }
}

</mosaic_0001>

<llo_original>
// kernel: graph_conv.1
$region0: #{graph_conv.1}
  #allocation0 [shape = 'u32[]', space=smem, size = 0x4, offset = 0x4, fixed_abs, tag = 'smem constant byte address 0x4 - core index']
  #allocation1 [shape = 'u32[144,128]{1,0:T(1,128)}', space=vmem, size = 0x12000, scoped, tag = 'internal scratch']
  #allocation2 [shape = 'f32[128,128]{1,0:T(8,128)}', space=vmem, size = 0x10000, scoped, tag = 'scratch operand']
  #allocation3 [shape = 's32[1]{0}', space=sflag, size = 0x4, scoped, tag = 'scoped memory for graph_conv.1']
  #allocation4 [shape = 'u8[2048]{0}', space=smem, size = 0x800, scoped, tag = 'prefetched SMEM operand 0']
  #allocation5 [shape = 'u8[512]{0}', space=smem, size = 0x200, scoped, tag = 'prefetched SMEM operand 1']
  %s0 = inlined_call_operand.vmem [shape: s32[3,3], index: 0, kind: input, shape index: {}]
  %s1 = inlined_call_operand.vmem [shape: s32[3], index: 1, kind: input, shape index: {}]
  %s2 = inlined_call_operand.vmem [shape: f32[384,1], index: 2, kind: input, shape index: {}]
  %s3 = inlined_call_operand.vmem [shape: bf16[384,384], index: 3, kind: input, shape index: {}]
  %s4 = inlined_call_operand.vmem [shape: bf16[384,128], index: 4, kind: input, shape index: {}]
  %s5 = inlined_call_operand.vmem [shape: f32[384,128], index: 5, kind: input, shape index: {}]
  %s6 = inlined_call_operand.vmem [shape: f32[384,128], index: 6, kind: output, shape index: {}]
  %s7 = sld [smem:[#allocation0]]
  $region102: #{graph_conv.1} parent=0
    _
  %s9 = ssub.s32 1, %s7
  %s10 = scalar_select 0, %s9, %s7
  %s11 = sshll.u32 %s0, 4
  %s12 = int_to_ptr.vmem [resolvable:$true] %s11
  %14 = dma.vmem_to_smem %s12, 64, [#allocation4], [#allocation3]
  %s15 = sshll.u32 %s1, 4
  %s16 = int_to_ptr.vmem [resolvable:$true] %s15
  %18 = dma.vmem_to_smem %s16, 16, [#allocation5], [#allocation3]
  %19 = dma.done [#allocation3], 80
  %20 = sfence
  $region1: #{graph_conv.1} parent=0
    #allocation6 [shape = 'u8[65536]{0}', space=vmem, size = 0x10000, scoped, tag = 'input window, operand 3']
    loop: start=0, step=1, limit=11
    $region2: #{graph_conv.1} parent=1 // loop_pre_header
      _
    $region3: #{graph_conv.1} parent=1 // loop_header
      %s22 = sphi 0, %s26
      %p23 = scmp.ge.s32.totalorder %s22, 11
      %s29 = sphi 0, %s48
      %s30 = sphi 0, %s44
      %s31 = sphi 0, %s40
      %s32 = sphi 0, %s29
      %s33 = sphi 0, %s30
      %s34 = sphi 0, %s31
      %s35 = sphi 0, %s32
      %s36 = sphi 0, %s33
      %s37 = sphi 0, %s34
      %s51 = sphi 0, %s53
      %s54 = sphi 0, %s51
      %s55 = sphi 0, %s54
      %s71 = sphi 0, %s55
      %s95 = sphi 0, %s97
      %s98 = sphi 0, %s95
      %s99 = sphi 0, %s98
      %s115 = sphi 0, %s99
      %s139 = sphi 0, %s141
      %s142 = sphi 0, %s139
      %s143 = sphi 0, %s142
      %s159 = sphi 0, %s143
      %s167 = sphi 0, %s169
      %s170 = sphi 0, %s167
      %s171 = sphi 0, %s170
      %s187 = sphi 0, %s171
      %s195 = sphi 0, %s197
      %s198 = sphi 0, %s195
      %s199 = sphi 0, %s198
      %s215 = sphi 0, %s199
    $region4: #{graph_conv.1} parent=1 // loop_header_branch
      %25 = sbr.rel (%p23) target = $region8
    $region5: #{graph_conv.1} parent=1 // loop_body
      %s27 = ssub.s32 %s22, 1
      %s28 = ssub.s32 %s22, 2
      %s38 = sadd.s32 1, %s31
      %p39 = scmp.ge.s32.totalorder %s38, 3
      %s40 = scalar_select %p39, 0, %s38
      %s41 = sadd.s32 1, %s30
      %s42 = scalar_select %p39, %s41, %s30
      %p43 = scmp.ge.s32.totalorder %s42, 1
      %s44 = scalar_select %p43, 0, %s42
      %s45 = sadd.s32 1, %s29
      %s46 = scalar_select %p43, %s45, %s29
      %p47 = scmp.ge.s32.totalorder %s46, 3
      %s48 = scalar_select %p47, 0, %s46
      %s49 = ssub.s32 %s29, %s48
      %p50 = scmp.eq.s32.totalorder %s49, 0
      %s52 = sadd.s32 %s51, 1
      %s53 = scalar_select %p50, %s51, %s52
      %p56 = pneg %p50
      %p57 = scmp.eq.s32.totalorder %s22, 8
      %p58 = por %p56, %p57
      %p59 = scmp.ne.s32.totalorder %s51, %s54
      %p60 = scmp.eq.s32.totalorder %s22, 0
      %p61 = por %p59, %p60
      %p62 = scmp.ne.s32.totalorder %s51, %s54
      %p63 = scmp.eq.s32.totalorder %s27, 8
      %p64 = por %p62, %p63
      %p65 = scmp.ne.s32.totalorder %s54, %s55
      %p66 = scmp.eq.s32.totalorder %s27, 0
      %p67 = por %p65, %p66
      %p68 = scmp.ne.s32.totalorder %s54, %s55
      %p69 = scmp.eq.s32.totalorder %s28, 8
      %p70 = por %p68, %p69
      %p72 = scmp.ne.s32.totalorder %s55, %s71
      %p73 = scmp.eq.s32.totalorder %s28, 0
      %p74 = por %p72, %p73
      %s75 = sshra.s32 %s31, 7
      %s76 = sand.u32 %s31, 127
      %s77 = sadd.s32 %s75, %s29
      %s78 = smul.u32 %s77, 128
      %s79 = sshra.s32 %s31, 7
      %s80 = sand.u32 %s31, 127
      %s81 = sadd.s32 %s78, %s80
      %s82 = sld [smem:[#allocation4 + %s81]]
      %s83 = sshra.s32 %s40, 7
      %s84 = sand.u32 %s40, 127
      %s85 = sadd.s32 %s83, %s48
      %s86 = smul.u32 %s85, 128
      %s87 = sshra.s32 %s40, 7
      %s88 = sand.u32 %s40, 127
      %s89 = sadd.s32 %s86, %s88
      %s90 = sld [smem:[#allocation4 + %s89]]
      %s91 = ssub.s32 %s29, %s48
      %s92 = ssub.s32 %s82, %s90
      %s93 = sor.u32 %s91, %s92
      %p94 = scmp.eq.s32.totalorder %s93, 0
      %s96 = sadd.s32 %s95, 1
      %s97 = scalar_select %p94, %s95, %s96
      %p100 = pneg %p94
      %p101 = scmp.eq.s32.totalorder %s22, 8
      %p102 = por %p100, %p101
      %p103 = scmp.ne.s32.totalorder %s95, %s98
      %p104 = scmp.eq.s32.totalorder %s22, 0
      %p105 = por %p103, %p104
      %p106 = scmp.ne.s32.totalorder %s95, %s98
      %p107 = scmp.eq.s32.totalorder %s27, 8
      %p108 = por %p106, %p107
      %p109 = scmp.ne.s32.totalorder %s98, %s99
      %p110 = scmp.eq.s32.totalorder %s27, 0
      %p111 = por %p109, %p110
      %p112 = scmp.ne.s32.totalorder %s98, %s99
      %p113 = scmp.eq.s32.totalorder %s28, 8
      %p114 = por %p112, %p113
      %p116 = scmp.ne.s32.totalorder %s99, %s115
      %p117 = scmp.eq.s32.totalorder %s28, 0
      %p118 = por %p116, %p117
      %s119 = sshra.s32 %s31, 7
      %s120 = sand.u32 %s31, 127
      %s121 = sadd.s32 %s119, %s29
      %s122 = smul.u32 %s121, 128
      %s123 = sshra.s32 %s31, 7
      %s124 = sand.u32 %s31, 127
      %s125 = sadd.s32 %s122, %s124
      %s126 = sld [smem:[#allocation4 + %s125]]
      %s127 = sshra.s32 %s40, 7
      %s128 = sand.u32 %s40, 127
      %s129 = sadd.s32 %s127, %s48
      %s130 = smul.u32 %s129, 128
      %s131 = sshra.s32 %s40, 7
      %s132 = sand.u32 %s40, 127
      %s133 = sadd.s32 %s130, %s132
      %s134 = sld [smem:[#allocation4 + %s133]]
      %s135 = ssub.s32 %s126, %s134
      %s136 = ssub.s32 %s30, %s44
      %s137 = sor.u32 %s135, %s136
      %p138 = scmp.eq.s32.totalorder %s137, 0
      %s140 = sadd.s32 %s139, 1
      %s141 = scalar_select %p138, %s139, %s140
      %p144 = pneg %p138
      %p145 = scmp.eq.s32.totalorder %s22, 8
      %p146 = por %p144, %p145
      %p147 = scmp.ne.s32.totalorder %s139, %s142
      %p148 = scmp.eq.s32.totalorder %s22, 0
      %p149 = por %p147, %p148
      %p150 = scmp.ne.s32.totalorder %s139, %s142
      %p151 = scmp.eq.s32.totalorder %s27, 8
      %p152 = por %p150, %p151
      %p153 = scmp.ne.s32.totalorder %s142, %s143
      %p154 = scmp.eq.s32.totalorder %s27, 0
      %p155 = por %p153, %p154
      %p156 = scmp.ne.s32.totalorder %s142, %s143
      %p157 = scmp.eq.s32.totalorder %s28, 8
      %p158 = por %p156, %p157
      %p160 = scmp.ne.s32.totalorder %s143, %s159
      %p161 = scmp.eq.s32.totalorder %s28, 0
      %p162 = por %p160, %p161
      %s163 = ssub.s32 %s29, %s48
      %s164 = ssub.s32 %s30, %s44
      %s165 = sor.u32 %s163, %s164
      %p166 = scmp.eq.s32.totalorder %s165, 0
      %s168 = sadd.s32 %s167, 1
      %s169 = scalar_select %p166, %s167, %s168
      %p172 = pneg %p166
      %p173 = scmp.eq.s32.totalorder %s22, 8
      %p174 = por %p172, %p173
      %p175 = scmp.ne.s32.totalorder %s167, %s170
      %p176 = scmp.eq.s32.totalorder %s22, 0
      %p177 = por %p175, %p176
      %p178 = scmp.ne.s32.totalorder %s167, %s170
      %p179 = scmp.eq.s32.totalorder %s27, 8
      %p180 = por %p178, %p179
      %p181 = scmp.ne.s32.totalorder %s170, %s171
      %p182 = scmp.eq.s32.totalorder %s27, 0
      %p183 = por %p181, %p182
      %p184 = scmp.ne.s32.totalorder %s170, %s171
      %p185 = scmp.eq.s32.totalorder %s28, 8
      %p186 = por %p184, %p185
      %p188 = scmp.ne.s32.totalorder %s171, %s187
      %p189 = scmp.eq.s32.totalorder %s28, 0
      %p190 = por %p188, %p189
      %s191 = ssub.s32 %s29, %s48
      %s192 = ssub.s32 %s30, %s44
      %s193 = sor.u32 %s191, %s192
      %p194 = scmp.eq.s32.totalorder %s193, 0
      %s196 = sadd.s32 %s195, 1
      %s197 = scalar_select %p194, %s195, %s196
      %p200 = pneg %p194
      %p201 = scmp.eq.s32.totalorder %s22, 8
      %p202 = por %p200, %p201
      %p203 = scmp.ne.s32.totalorder %s195, %s198
      %p204 = scmp.eq.s32.totalorder %s22, 0
      %p205 = por %p203, %p204
      %p206 = scmp.ne.s32.totalorder %s195, %s198
      %p207 = scmp.eq.s32.totalorder %s27, 8
      %p208 = por %p206, %p207
      %p209 = scmp.ne.s32.totalorder %s198, %s199
      %p210 = scmp.eq.s32.totalorder %s27, 0
      %p211 = por %p209, %p210
      %p212 = scmp.ne.s32.totalorder %s198, %s199
      %p213 = scmp.eq.s32.totalorder %s28, 8
      %p214 = por %p212, %p213
      %p216 = scmp.ne.s32.totalorder %s199, %s215
      %p217 = scmp.eq.s32.totalorder %s28, 0
      %p218 = por %p216, %p217
      %p219 = scmp.le.s32.totalorder 1, %s22
      %p220 = scmp.lt.s32.totalorder %s22, 10
      %p221 = pnand %p219, %p220
      %p222 = pneg %p221
      // Predicated region
      $region9: #{graph_conv.1} parent=5 // pred_check
        _
      $region10: #{graph_conv.1} parent=5 // pred_check_branch
        %224 = sbr.rel (%p221) target = $region12
      $region11: #{graph_conv.1} parent=5 // pred_region
        %s225 = ssub.s32 %s22, 1
      $region12: #{graph_conv.1} parent=5 // pred_fallthru
        _
      %p226 = scmp.lt.s32.totalorder %s22, 9
      // Predicated region
      $region13: #{graph_conv.1} parent=5 // pred_check
        %p227 = pneg %p226
      $region14: #{graph_conv.1} parent=5 // pred_check_branch
        %229 = sbr.rel (%p227) target = $region16
      $region15: #{graph_conv.1} parent=5 // pred_region
        // Predicated region
        $region17: #{graph_conv.1} parent=15 // pred_check
          %p230 = pneg %p61
        $region18: #{graph_conv.1} parent=15 // pred_check_branch
          %232 = sbr.rel (%p230) target = $region20
        $region19: #{graph_conv.1} parent=15 // pred_region
          %s233 = smul.u32 16, %s29
          %p234 = scmp.lt.s32.totalorder %s233, 47
          %s235 = scalar_select %p234, %s233, 47
          %s236 = smul.addr %s235, 8
          %s237 = scalar_lea.vmem %s2, %s236
          %s238 = smul.u32 16, %s29
        $region20: #{graph_conv.1} parent=15 // pred_fallthru
          _
        // Predicated region
        $region21: #{graph_conv.1} parent=15 // pred_check
          %p239 = pneg %p105
        $region22: #{graph_conv.1} parent=15 // pred_check_branch
          %241 = sbr.rel (%p239) target = $region24
        $region23: #{graph_conv.1} parent=15 // pred_region
          %s242 = sand.u32 %s95, 1
          %s243 = sand.u32 %s95, 1
          %s244 = smul.addr %s243, 64
          %s245 = scalar_lea.vmem [#allocation6], %s244
          %s246 = sshra.s32 %s31, 7
          %s247 = sand.u32 %s31, 127
          %s248 = sadd.s32 %s246, %s29
          %s249 = smul.u32 %s248, 128
          %s250 = sshra.s32 %s31, 7
          %s251 = sand.u32 %s31, 127
          %s252 = sadd.s32 %s249, %s251
          %s253 = sld [smem:[#allocation4 + %s252]]
          %s254 = smul.u32 16, %s29
          %s255 = smul.addr %s254, 3
          %s256 = sadd.s32 %s253, %s255
          %s257 = smul.addr %s256, 4
          %s258 = scalar_lea.vmem %s3, %s257
          // Predicated region
          $region25: #{graph_conv.1} parent=23 // pred_check
            _
          $region26: #{graph_conv.1} parent=23 // pred_check_branch
            %260 = sbr.rel (0) target = $region28
          $region27: #{graph_conv.1} parent=23 // pred_region
            // Predicated region
            $region29: #{graph_conv.1} parent=27 // pred_check
              _
            $region30: #{graph_conv.1} parent=27 // pred_check_branch
              %262 = sbr.rel target = $region32
            $region31: #{graph_conv.1} parent=27 // pred_region
              // Predicated region
              $region44: #{graph_conv.1} parent=31 // pred_check
                _
              $region45: #{graph_conv.1} parent=31 // pred_check_branch
                %307 = sbr.rel (0) target = $region47
              $region46: #{graph_conv.1} parent=31 // pred_region
                loop: start=0, step=1, limit=1
                $region48: #{graph_conv.1} parent=46 // loop_pre_header
                  _
                $region49: #{graph_conv.1} parent=46 // loop_header
                  %s309 = sphi 0, %s313
                  %p310 = scmp.ge.s32.totalorder %s309, 1
                  %s314 = sphi %s258, %s258
                  %s315 = sphi %s245, %s245
                $region50: #{graph_conv.1} parent=46 // loop_header_branch
                  %312 = sbr.rel (%p310) target = $region54
                $region51: #{graph_conv.1} parent=46 // loop_body
                  _
                $region52: #{graph_conv.1} parent=46 // loop_footer
                  %s313 = sadd.s32 1, %s309
                $region53: #{graph_conv.1} parent=46 // loop_footer_branch
                  %308 = sbr.rel target = $region49
                $region54: #{graph_conv.1} parent=46 // loop_exit
                  _
                loop: start=0, step=1, limit=1
                $region55: #{graph_conv.1} parent=46 // loop_pre_header
                  _
                $region56: #{graph_conv.1} parent=46 // loop_header
                  %s318 = sphi 0, %s322
                  %p319 = scmp.ge.s32.totalorder %s318, 1
                  %s323 = sphi %s258, %s258
                  %s324 = sphi %s245, %s245
                $region57: #{graph_conv.1} parent=46 // loop_header_branch
                  %321 = sbr.rel (%p319) target = $region61
                $region58: #{graph_conv.1} parent=46 // loop_body
                  %v325 = vld [vmem:[%s323] sm:$0xf]
                  %326 = vst [vmem:[%s324] sm:$0xf] %v325
                  %v327 = vld [vmem:[%s323 + $0xc] sm:$0xf]
                  %328 = vst [vmem:[%s324 + $0x4] sm:$0xf] %v327
                  %v329 = vld [vmem:[%s323 + $0x18] sm:$0xf]
                  %330 = vst [vmem:[%s324 + $0x8] sm:$0xf] %v329
                  %v331 = vld [vmem:[%s323 + $0x24] sm:$0xf]
                  %332 = vst [vmem:[%s324 + $0xc] sm:$0xf] %v331
                  %v333 = vld [vmem:[%s323 + $0x30] sm:$0xf]
                  %334 = vst [vmem:[%s324 + $0x10] sm:$0xf] %v333
                  %v335 = vld [vmem:[%s323 + $0x3c] sm:$0xf]
                  %336 = vst [vmem:[%s324 + $0x14] sm:$0xf] %v335
                  %v337 = vld [vmem:[%s323 + $0x48] sm:$0xf]
                  %338 = vst [vmem:[%s324 + $0x18] sm:$0xf] %v337
                  %v339 = vld [vmem:[%s323 + $0x54] sm:$0xf]
                  %340 = vst [vmem:[%s324 + $0x1c] sm:$0xf] %v339
                  %v341 = vld [vmem:[%s323 + $0x60] sm:$0xf]
                  %342 = vst [vmem:[%s324 + $0x20] sm:$0xf] %v341
                  %v343 = vld [vmem:[%s323 + $0x6c] sm:$0xf]
                  %344 = vst [vmem:[%s324 + $0x24] sm:$0xf] %v343
                  %v345 = vld [vmem:[%s323 + $0x78] sm:$0xf]
                  %346 = vst [vmem:[%s324 + $0x28] sm:$0xf] %v345
                  %v347 = vld [vmem:[%s323 + $0x84] sm:$0xf]
                  %348 = vst [vmem:[%s324 + $0x2c] sm:$0xf] %v347
                  %v349 = vld [vmem:[%s323 + $0x90] sm:$0xf]
                  %350 = vst [vmem:[%s324 + $0x30] sm:$0xf] %v349
                  %v351 = vld [vmem:[%s323 + $0x9c] sm:$0xf]
                  %352 = vst [vmem:[%s324 + $0x34] sm:$0xf] %v351
                  %v353 = vld [vmem:[%s323 + $0xa8] sm:$0xf]
                  %354 = vst [vmem:[%s324 + $0x38] sm:$0xf] %v353
                  %v355 = vld [vmem:[%s323 + $0xb4] sm:$0xf]
                  %356 = vst [vmem:[%s324 + $0x3c] sm:$0xf] %v355
                $region59: #{graph_conv.1} parent=46 // loop_footer
                  %s322 = sadd.s32 1, %s318
                $region60: #{graph_conv.1} parent=46 // loop_footer_branch
                  %317 = sbr.rel target = $region56
                $region61: #{graph_conv.1} parent=46 // loop_exit
                  _
              $region47: #{graph_conv.1} parent=31 // pred_fallthru
                _
            $region32: #{graph_conv.1} parent=27 // pred_fallthru
              _
            // Predicated region
            $region33: #{graph_conv.1} parent=27 // pred_check
              _
            $region34: #{graph_conv.1} parent=27 // pred_check_branch
              %264 = sbr.rel (0) target = $region36
            $region35: #{graph_conv.1} parent=27 // pred_region
              loop: start=0, step=1, limit=1
              $region37: #{graph_conv.1} parent=35 // loop_pre_header
                _
              $region38: #{graph_conv.1} parent=35 // loop_header
                %s267 = sphi 0, %s271
                %p268 = scmp.ge.s32.totalorder %s267, 1
                %s272 = sphi %s258, %s258
                %s273 = sphi %s245, %s245
              $region39: #{graph_conv.1} parent=35 // loop_header_branch
                %270 = sbr.rel (%p268) target = $region43
              $region40: #{graph_conv.1} parent=35 // loop_body
                %v274 = vld [vmem:[%s272] sm:$0xf]
                %275 = vst [vmem:[%s273] sm:$0xf] %v274
                %v276 = vld [vmem:[%s272 + $0xc] sm:$0xf]
                %277 = vst [vmem:[%s273 + $0x4] sm:$0xf] %v276
                %v278 = vld [vmem:[%s272 + $0x18] sm:$0xf]
                %279 = vst [vmem:[%s273 + $0x8] sm:$0xf] %v278
                %v280 = vld [vmem:[%s272 + $0x24] sm:$0xf]
                %281 = vst [vmem:[%s273 + $0xc] sm:$0xf] %v280
                %v282 = vld [vmem:[%s272 + $0x30] sm:$0xf]
                %283 = vst [vmem:[%s273 + $0x10] sm:$0xf] %v282
                %v284 = vld [vmem:[%s272 + $0x3c] sm:$0xf]
                %285 = vst [vmem:[%s273 + $0x14] sm:$0xf] %v284
                %v286 = vld [vmem:[%s272 + $0x48] sm:$0xf]
                %287 = vst [vmem:[%s273 + $0x18] sm:$0xf] %v286
                %v288 = vld [vmem:[%s272 + $0x54] sm:$0xf]
                %289 = vst [vmem:[%s273 + $0x1c] sm:$0xf] %v288
                %v290 = vld [vmem:[%s272 + $0x60] sm:$0xf]
                %291 = vst [vmem:[%s273 + $0x20] sm:$0xf] %v290
                %v292 = vld [vmem:[%s272 + $0x6c] sm:$0xf]
                %293 = vst [vmem:[%s273 + $0x24] sm:$0xf] %v292
                %v294 = vld [vmem:[%s272 + $0x78] sm:$0xf]
                %295 = vst [vmem:[%s273 + $0x28] sm:$0xf] %v294
                %v296 = vld [vmem:[%s272 + $0x84] sm:$0xf]
                %297 = vst [vmem:[%s273 + $0x2c] sm:$0xf] %v296
                %v298 = vld [vmem:[%s272 + $0x90] sm:$0xf]
                %299 = vst [vmem:[%s273 + $0x30] sm:$0xf] %v298
                %v300 = vld [vmem:[%s272 + $0x9c] sm:$0xf]
                %301 = vst [vmem:[%s273 + $0x34] sm:$0xf] %v300
                %v302 = vld [vmem:[%s272 + $0xa8] sm:$0xf]
                %303 = vst [vmem:[%s273 + $0x38] sm:$0xf] %v302
                %v304 = vld [vmem:[%s272 + $0xb4] sm:$0xf]
                %305 = vst [vmem:[%s273 + $0x3c] sm:$0xf] %v304
              $region41: #{graph_conv.1} parent=35 // loop_footer
                %s271 = sadd.s32 1, %s267
              $region42: #{graph_conv.1} parent=35 // loop_footer_branch
                %266 = sbr.rel target = $region38
              $region43: #{graph_conv.1} parent=35 // loop_exit
                _
            $region36: #{graph_conv.1} parent=27 // pred_fallthru
              _
          $region28: #{graph_conv.1} parent=23 // pred_fallthru
            _
          %357 = vnop
        $region24: #{graph_conv.1} parent=15 // pred_fallthru
          _
        // Predicated region
        $region62: #{graph_conv.1} parent=15 // pred_check
          %p358 = pneg %p149
        $region63: #{graph_conv.1} parent=15 // pred_check_branch
          %360 = sbr.rel (%p358) target = $region65
        $region64: #{graph_conv.1} parent=15 // pred_region
          %s361 = sshra.s32 %s31, 7
          %s362 = sand.u32 %s31, 127
          %s363 = sadd.s32 %s361, %s29
          %s364 = smul.u32 %s363, 128
          %s365 = sshra.s32 %s31, 7
          %s366 = sand.u32 %s31, 127
          %s367 = sadd.s32 %s364, %s366
          %s368 = sld [smem:[#allocation4 + %s367]]
          %s369 = smul.u32 16, %s368
          %p370 = scmp.lt.s32.totalorder %s369, 47
          %s371 = scalar_select %p370, %s369, 47
          %p372 = scmp.lt.s32.totalorder %s30, 0
          %s373 = scalar_select %p372, %s30, 0
          %s374 = sadd.s32 %s373, %s371
          %s375 = smul.addr %s374, 4
          %s376 = scalar_lea.vmem %s4, %s375
          %s377 = sshra.s32 %s31, 7
          %s378 = sand.u32 %s31, 127
          %s379 = sadd.s32 %s377, %s29
          %s380 = smul.u32 %s379, 128
          %s381 = sshra.s32 %s31, 7
          %s382 = sand.u32 %s31, 127
          %s383 = sadd.s32 %s380, %s382
          %s384 = sld [smem:[#allocation4 + %s383]]
          %s385 = smul.u32 16, %s384
        $region65: #{graph_conv.1} parent=15 // pred_fallthru
          _
        // Predicated region
        $region66: #{graph_conv.1} parent=15 // pred_check
          %p386 = pneg %p177
        $region67: #{graph_conv.1} parent=15 // pred_check_branch
          %388 = sbr.rel (%p386) target = $region69
        $region68: #{graph_conv.1} parent=15 // pred_region
          %s389 = smul.u32 16, %s29
          %p390 = scmp.lt.s32.totalorder %s389, 47
          %s391 = scalar_select %p390, %s389, 47
          %p392 = scmp.lt.s32.totalorder %s30, 0
          %s393 = scalar_select %p392, %s30, 0
          %s394 = sadd.s32 %s393, %s391
          %s395 = smul.addr %s394, 8
          %s396 = scalar_lea.vmem %s5, %s395
          %s397 = smul.u32 16, %s29
        $region69: #{graph_conv.1} parent=15 // pred_fallthru
          _
      $region16: #{graph_conv.1} parent=5 // pred_fallthru
        _
      %p398 = scmp.le.s32.totalorder 1, %s22
      %p399 = scmp.lt.s32.totalorder %s22, 10
      %p400 = pnand %p398, %p399
      %p401 = pneg %p400
      // Predicated region
      $region70: #{graph_conv.1} parent=5 // pred_check
        _
      $region71: #{graph_conv.1} parent=5 // pred_check_branch
        %403 = sbr.rel (%p400) target = $region73
      $region72: #{graph_conv.1} parent=5 // pred_region
        %s404 = ssub.s32 %s22, 1
        %s405 = sand.u32 %s98, 1
        %s406 = sand.u32 %s98, 1
        %s407 = smul.addr %s406, 64
        %s408 = scalar_lea.vmem [#allocation6], %s407
        // Predicated region
        $region74: #{graph_conv.1} parent=72 // pred_check
          %p409 = pneg %p111
        $region75: #{graph_conv.1} parent=72 // pred_check_branch
          %411 = sbr.rel (%p409) target = $region77
        $region76: #{graph_conv.1} parent=72 // pred_region
          _
        $region77: #{graph_conv.1} parent=72 // pred_fallthru
          _
        %s412 = smul.u32 16, %s32
        %p413 = scmp.lt.s32.totalorder %s412, 47
        %s414 = scalar_select %p413, %s412, 47
        %s415 = smul.addr %s414, 8
        %s416 = scalar_lea.vmem %s2, %s415
        %p417 = pneg %p67
        %p418 = pneg %p64
        %s419 = sand.u32 %s98, 1
        %s420 = sand.u32 %s98, 1
        %s421 = smul.addr %s420, 64
        %s422 = scalar_lea.vmem [#allocation6], %s421
        %p423 = pneg %p111
        %p424 = pneg %p108
        %s425 = sshra.s32 %s34, 7
        %s426 = sand.u32 %s34, 127
        %s427 = sadd.s32 %s425, %s32
        %s428 = smul.u32 %s427, 128
        %s429 = sshra.s32 %s34, 7
        %s430 = sand.u32 %s34, 127
        %s431 = sadd.s32 %s428, %s430
        %s432 = sld [smem:[#allocation4 + %s431]]
        %s433 = smul.u32 16, %s432
        %p434 = scmp.lt.s32.totalorder %s433, 47
        %s435 = scalar_select %p434, %s433, 47
        %p436 = scmp.lt.s32.totalorder %s33, 0
        %s437 = scalar_select %p436, %s33, 0
        %s438 = sadd.s32 %s437, %s435
        %s439 = smul.addr %s438, 4
        %s440 = scalar_lea.vmem %s4, %s439
        %p441 = pneg %p155
        %p442 = pneg %p152
        %s443 = smul.u32 16, %s32
        %p444 = scmp.lt.s32.totalorder %s443, 47
        %s445 = scalar_select %p444, %s443, 47
        %p446 = scmp.lt.s32.totalorder %s33, 0
        %s447 = scalar_select %p446, %s33, 0
        %s448 = sadd.s32 %s447, %s445
        %s449 = smul.addr %s448, 8
        %s450 = scalar_lea.vmem %s5, %s449
        %p451 = pneg %p183
        %p452 = pneg %p180
        %p453 = pneg %p211
        %p454 = pneg %p208
        %s455 = smul.u32 16, %s32
        %p456 = scmp.lt.s32.totalorder %s455, 47
        %s457 = scalar_select %p456, %s455, 47
        %p458 = scmp.lt.s32.totalorder %s33, 0
        %s459 = scalar_select %p458, %s33, 0
        %s460 = sadd.s32 %s459, %s457
        %s461 = smul.addr %s460, 8
        %s462 = scalar_lea.vmem %s6, %s461
        %s463 = smul.u32 16, %s32
        %p464 = scmp.lt.s32.totalorder %s463, 47
        %s465 = scalar_select %p464, %s463, 47
        %s466 = smul.addr %s465, 8
        %s467 = scalar_lea.vmem %s2, %s466
        %s468 = smul.u32 16, %s32
        %s469 = sshra.s32 %s34, 7
        %s470 = sand.u32 %s34, 127
        %s471 = sadd.s32 %s469, %s32
        %s472 = smul.u32 %s471, 128
        %s473 = sshra.s32 %s34, 7
        %s474 = sand.u32 %s34, 127
        %s475 = sadd.s32 %s472, %s474
        %s476 = sld [smem:[#allocation4 + %s475]]
        %s477 = smul.u32 16, %s32
        %s478 = sshra.s32 %s34, 7
        %s479 = sand.u32 %s34, 127
        %s480 = sadd.s32 %s478, %s32
        %s481 = smul.u32 %s480, 128
        %s482 = sshra.s32 %s34, 7
        %s483 = sand.u32 %s34, 127
        %s484 = sadd.s32 %s481, %s483
        %s485 = sld [smem:[#allocation4 + %s484]]
        %s486 = smul.u32 16, %s485
        %p487 = scmp.lt.s32.totalorder %s486, 47
        %s488 = scalar_select %p487, %s486, 47
        %p489 = scmp.lt.s32.totalorder %s33, 0
        %s490 = scalar_select %p489, %s33, 0
        %s491 = sadd.s32 %s490, %s488
        %s492 = smul.addr %s491, 4
        %s493 = scalar_lea.vmem %s4, %s492
        %s494 = sshra.s32 %s34, 7
        %s495 = sand.u32 %s34, 127
        %s496 = sadd.s32 %s494, %s32
        %s497 = smul.u32 %s496, 128
        %s498 = sshra.s32 %s34, 7
        %s499 = sand.u32 %s34, 127
        %s500 = sadd.s32 %s497, %s499
        %s501 = sld [smem:[#allocation4 + %s500]]
        %s502 = smul.u32 16, %s501
        %s503 = smul.u32 16, %s32
        %p504 = scmp.lt.s32.totalorder %s503, 47
        %s505 = scalar_select %p504, %s503, 47
        %p506 = scmp.lt.s32.totalorder %s33, 0
        %s507 = scalar_select %p506, %s33, 0
        %s508 = sadd.s32 %s507, %s505
        %s509 = smul.addr %s508, 8
        %s510 = scalar_lea.vmem %s5, %s509
        %s511 = smul.u32 16, %s32
        %s512 = smul.u32 16, %s32
        %p513 = scmp.lt.s32.totalorder %s512, 47
        %s514 = scalar_select %p513, %s512, 47
        %p515 = scmp.lt.s32.totalorder %s33, 0
        %s516 = scalar_select %p515, %s33, 0
        %s517 = sadd.s32 %s516, %s514
        %s518 = smul.addr %s517, 8
        %s519 = scalar_lea.vmem %s6, %s518
        %s520 = smul.u32 16, %s32
        %p522 = scmp.eq.s32.totalorder %s34, 0
        // Predicated region
        $region78: #{graph_conv.1} parent=72 // pred_check
          %p523 = pneg %p522
        $region79: #{graph_conv.1} parent=72 // pred_check_branch
          %525 = sbr.rel (%p523) target = $region81
        $region80: #{graph_conv.1} parent=72 // pred_region
          %526 = vst [vmem:[#allocation2] sm:$0xff] 0.0
          %527 = vst [vmem:[#allocation2 + $0x8] sm:$0xff] 0.0
          %528 = vst [vmem:[#allocation2 + $0x10] sm:$0xff] 0.0
          %529 = vst [vmem:[#allocation2 + $0x18] sm:$0xff] 0.0
          %530 = vst [vmem:[#allocation2 + $0x20] sm:$0xff] 0.0
          %531 = vst [vmem:[#allocation2 + $0x28] sm:$0xff] 0.0
          %532 = vst [vmem:[#allocation2 + $0x30] sm:$0xff] 0.0
          %533 = vst [vmem:[#allocation2 + $0x38] sm:$0xff] 0.0
          %534 = vst [vmem:[#allocation2 + $0x40] sm:$0xff] 0.0
          %535 = vst [vmem:[#allocation2 + $0x48] sm:$0xff] 0.0
          %536 = vst [vmem:[#allocation2 + $0x50] sm:$0xff] 0.0
          %537 = vst [vmem:[#allocation2 + $0x58] sm:$0xff] 0.0
          %538 = vst [vmem:[#allocation2 + $0x60] sm:$0xff] 0.0
          %539 = vst [vmem:[#allocation2 + $0x68] sm:$0xff] 0.0
          %540 = vst [vmem:[#allocation2 + $0x70] sm:$0xff] 0.0
          %541 = vst [vmem:[#allocation2 + $0x78] sm:$0xff] 0.0
        $region81: #{graph_conv.1} parent=72 // pred_fallthru
          _
        %s542 = sld [smem:[#allocation5 + %s32]]
        %p543 = scmp.lt.s32.totalorder %s34, %s542
        // Predicated region
        $region82: #{graph_conv.1} parent=72 // pred_check
          %p544 = pneg %p543
        $region83: #{graph_conv.1} parent=72 // pred_check_branch
          %546 = sbr.rel (%p544) target = $region85
        $region84: #{graph_conv.1} parent=72 // pred_region
          %v547 = vld [vmem:[#allocation2] sm:$0xff]
          %v548 = vld [vmem:[#allocation2 + $0x8] sm:$0xff]
          %v549 = vld [vmem:[#allocation2 + $0x10] sm:$0xff]
          %v550 = vld [vmem:[#allocation2 + $0x18] sm:$0xff]
          %v551 = vld [vmem:[#allocation2 + $0x20] sm:$0xff]
          %v552 = vld [vmem:[#allocation2 + $0x28] sm:$0xff]
          %v553 = vld [vmem:[#allocation2 + $0x30] sm:$0xff]
          %v554 = vld [vmem:[#allocation2 + $0x38] sm:$0xff]
          %v555 = vld [vmem:[#allocation2 + $0x40] sm:$0xff]
          %v556 = vld [vmem:[#allocation2 + $0x48] sm:$0xff]
          %v557 = vld [vmem:[#allocation2 + $0x50] sm:$0xff]
          %v558 = vld [vmem:[#allocation2 + $0x58] sm:$0xff]
          %v559 = vld [vmem:[#allocation2 + $0x60] sm:$0xff]
          %v560 = vld [vmem:[#allocation2 + $0x68] sm:$0xff]
          %v561 = vld [vmem:[#allocation2 + $0x70] sm:$0xff]
          %v562 = vld [vmem:[#allocation2 + $0x78] sm:$0xff]
          %v563 = vld [vmem:[%s408] sm:$0xf]
          %v564 = vld [vmem:[%s408 + $0x4] sm:$0xf]
          %v565 = vld [vmem:[%s408 + $0x8] sm:$0xf]
          %v566 = vld [vmem:[%s408 + $0xc] sm:$0xf]
          %v567 = vld [vmem:[%s408 + $0x10] sm:$0xf]
          %v568 = vld [vmem:[%s408 + $0x14] sm:$0xf]
          %v569 = vld [vmem:[%s408 + $0x18] sm:$0xf]
          %v570 = vld [vmem:[%s408 + $0x1c] sm:$0xf]
          %v571 = vld [vmem:[%s408 + $0x20] sm:$0xf]
          %v572 = vld [vmem:[%s408 + $0x24] sm:$0xf]
          %v573 = vld [vmem:[%s408 + $0x28] sm:$0xf]
          %v574 = vld [vmem:[%s408 + $0x2c] sm:$0xf]
          %v575 = vld [vmem:[%s408 + $0x30] sm:$0xf]
          %v576 = vld [vmem:[%s408 + $0x34] sm:$0xf]
          %v577 = vld [vmem:[%s408 + $0x38] sm:$0xf]
          %v578 = vld [vmem:[%s408 + $0x3c] sm:$0xf]
          %v579 = vld [vmem:[%s493] sm:$0xf]
          %v580 = vld [vmem:[%s493 + $0x4] sm:$0xf]
          %v581 = vld [vmem:[%s493 + $0x8] sm:$0xf]
          %v582 = vld [vmem:[%s493 + $0xc] sm:$0xf]
          %v583 = vld [vmem:[%s493 + $0x10] sm:$0xf]
          %v584 = vld [vmem:[%s493 + $0x14] sm:$0xf]
          %v585 = vld [vmem:[%s493 + $0x18] sm:$0xf]
          %v586 = vld [vmem:[%s493 + $0x1c] sm:$0xf]
          %v587 = vld [vmem:[%s493 + $0x20] sm:$0xf]
          %v588 = vld [vmem:[%s493 + $0x24] sm:$0xf]
          %v589 = vld [vmem:[%s493 + $0x28] sm:$0xf]
          %v590 = vld [vmem:[%s493 + $0x2c] sm:$0xf]
          %v591 = vld [vmem:[%s493 + $0x30] sm:$0xf]
          %v592 = vld [vmem:[%s493 + $0x34] sm:$0xf]
          %v593 = vld [vmem:[%s493 + $0x38] sm:$0xf]
          %v594 = vld [vmem:[%s493 + $0x3c] sm:$0xf]
          %v611 = vunpack.c.l.b16 %v563
          %v612 = vunpack.c.l.b16 %v564
          %v613 = vunpack.c.l.b16 %v565
          %v614 = vunpack.c.l.b16 %v566
          %v615 = vunpack.c.l.b16 %v567
          %v616 = vunpack.c.l.b16 %v568
          %v617 = vunpack.c.l.b16 %v569
          %v618 = vunpack.c.l.b16 %v570
          %v619 = vunpack.c.l.b16 %v571
          %v620 = vunpack.c.l.b16 %v572
          %v621 = vunpack.c.l.b16 %v573
          %v622 = vunpack.c.l.b16 %v574
          %v623 = vunpack.c.l.b16 %v575
          %v624 = vunpack.c.l.b16 %v576
          %v625 = vunpack.c.l.b16 %v577
          %v626 = vunpack.c.l.b16 %v578
          %v627 = vpack.c.b16 %v612, %v611
          %v628 = vpack.c.b16 %v614, %v613
          %v629 = vpack.c.b16 %v616, %v615
          %v630 = vpack.c.b16 %v618, %v617
          %v631 = vpack.c.b16 %v620, %v619
          %v632 = vpack.c.b16 %v622, %v621
          %v633 = vpack.c.b16 %v624, %v623
          %v634 = vpack.c.b16 %v626, %v625
          %v659 = vunpack.c.l.b16 %v579
          %v660 = vunpack.c.l.b16 %v580
          %v661 = vunpack.c.l.b16 %v581
          %v662 = vunpack.c.l.b16 %v582
          %v663 = vunpack.c.l.b16 %v583
          %v664 = vunpack.c.l.b16 %v584
          %v665 = vunpack.c.l.b16 %v585
          %v666 = vunpack.c.l.b16 %v586
          %v667 = vunpack.c.l.b16 %v587
          %v668 = vunpack.c.l.b16 %v588
          %v669 = vunpack.c.l.b16 %v589
          %v670 = vunpack.c.l.b16 %v590
          %v671 = vunpack.c.l.b16 %v591
          %v672 = vunpack.c.l.b16 %v592
          %v673 = vunpack.c.l.b16 %v593
          %v674 = vunpack.c.l.b16 %v594
          %v675 = vpack.c.b16 %v660, %v659
          %v676 = vpack.c.b16 %v662, %v661
          %v677 = vpack.c.b16 %v664, %v663
          %v678 = vpack.c.b16 %v666, %v665
          %v679 = vpack.c.b16 %v668, %v667
          %v680 = vpack.c.b16 %v670, %v669
          %v681 = vpack.c.b16 %v672, %v671
          %v682 = vpack.c.b16 %v674, %v673
          %691 = vmatprep.subr.bf16.mxu0 0
          %692 = vmatpush1.bf16.msra.mxu0 %v675
          %693 = vmatprep.subr.bf16.mxu0 0
          %694 = vmatpush1.bf16.msra.mxu0 %v676
          %695 = vmatprep.subr.bf16.mxu0 0
          %696 = vmatpush1.bf16.msra.mxu0 %v677
          %697 = vmatprep.subr.bf16.mxu0 0
          %698 = vmatpush1.bf16.msra.mxu0 %v678
          %699 = vmatprep.subr.bf16.mxu0 0
          %700 = vmatpush1.bf16.msra.mxu0 %v679
          %701 = vmatprep.subr.bf16.mxu0 0
          %702 = vmatpush1.bf16.msra.mxu0 %v680
          %703 = vmatprep.subr.bf16.mxu0 0
          %704 = vmatpush1.bf16.msra.mxu0 %v681
          %705 = vmatprep.subr.bf16.mxu0 0
          %706 = vmatpush1.bf16.msra.mxu0 %v682
          %707 = vmatprep.subr.bf16.mxu0 0
          %708 = vmatpush1.bf16.msra.mxu0 0
          %709 = vmatprep.subr.bf16.mxu0 0
          %710 = vmatpush1.bf16.msra.mxu0 0
          %711 = vmatprep.subr.bf16.mxu0 0
          %712 = vmatpush1.bf16.msra.mxu0 0
          %713 = vmatprep.subr.bf16.mxu0 0
          %714 = vmatpush1.bf16.msra.mxu0 0
          %715 = vmatprep.subr.bf16.mxu0 0
          %716 = vmatpush1.bf16.msra.mxu0 0
          %717 = vmatprep.subr.bf16.mxu0 0
          %718 = vmatpush1.bf16.msra.mxu0 0
          %719 = vmatprep.subr.bf16.mxu0 0
          %720 = vmatpush1.bf16.msra.mxu0 0
          %721 = vmatprep.subr.bf16.mxu0 0
          %722 = vmatpush1.bf16.msra.mxu0 0
          %723 = vmatprep.mubr.bf16.mxu0 0
          %724 = vmatmul.mubr.bf16.gmra.mrb[0].mxu0 %v627
          %v725 = vpop.f32.mrb[0].mxu0
          %v726 = vadd.f32 0.0, %v725
          %v727 = vpop.f32.mrb[0].mxu0
          %v728 = vpop.f32.mrb[0].mxu0
          %v729 = vadd.f32 0.0, %v728
          %v730 = vpop.f32.mrb[0].mxu0
          %731 = vmatprep.mubr.bf16.mxu0 0
          %732 = vmatmul.mubr.bf16.gmra.mrb[0].mxu0 %v628
          %v733 = vpop.f32.mrb[0].mxu0
          %v734 = vadd.f32 0.0, %v733
          %v735 = vpop.f32.mrb[0].mxu0
          %v736 = vpop.f32.mrb[0].mxu0
          %v737 = vadd.f32 0.0, %v736
          %v738 = vpop.f32.mrb[0].mxu0
          %739 = vmatprep.mubr.bf16.mxu0 0
          %740 = vmatmul.mubr.bf16.gmra.mrb[0].mxu0 %v629
          %v741 = vpop.f32.mrb[0].mxu0
          %v742 = vadd.f32 0.0, %v741
          %v743 = vpop.f32.mrb[0].mxu0
          %v744 = vpop.f32.mrb[0].mxu0
          %v745 = vadd.f32 0.0, %v744
          %v746 = vpop.f32.mrb[0].mxu0
          %747 = vmatprep.mubr.bf16.mxu0 0
          %748 = vmatmul.mubr.bf16.gmra.mrb[0].mxu0 %v630
          %v749 = vpop.f32.mrb[0].mxu0
          %v750 = vadd.f32 0.0, %v749
          %v751 = vpop.f32.mrb[0].mxu0
          %v752 = vpop.f32.mrb[0].mxu0
          %v753 = vadd.f32 0.0, %v752
          %v754 = vpop.f32.mrb[0].mxu0
          %755 = vmatprep.mubr.bf16.mxu0 0
          %756 = vmatmul.mubr.bf16.gmra.mrb[0].mxu0 %v631
          %v757 = vpop.f32.mrb[0].mxu0
          %v758 = vadd.f32 0.0, %v757
          %v759 = vpop.f32.mrb[0].mxu0
          %v760 = vpop.f32.mrb[0].mxu0
          %v761 = vadd.f32 0.0, %v760
          %v762 = vpop.f32.mrb[0].mxu0
          %763 = vmatprep.mubr.bf16.mxu0 0
          %764 = vmatmul.mubr.bf16.gmra.mrb[0].mxu0 %v632
          %v765 = vpop.f32.mrb[0].mxu0
          %v766 = vadd.f32 0.0, %v765
          %v767 = vpop.f32.mrb[0].mxu0
          %v768 = vpop.f32.mrb[0].mxu0
          %v769 = vadd.f32 0.0, %v768
          %v770 = vpop.f32.mrb[0].mxu0
          %771 = vmatprep.mubr.bf16.mxu0 0
          %772 = vmatmul.mubr.bf16.gmra.mrb[0].mxu0 %v633
          %v773 = vpop.f32.mrb[0].mxu0
          %v774 = vadd.f32 0.0, %v773
          %v775 = vpop.f32.mrb[0].mxu0
          %v776 = vpop.f32.mrb[0].mxu0
          %v777 = vadd.f32 0.0, %v776
          %v778 = vpop.f32.mrb[0].mxu0
          %779 = vmatprep.mubr.bf16.mxu0 0
          %780 = vmatmul.mubr.bf16.gmra.mrb[0].mxu0 %v634
          %v781 = vpop.f32.mrb[0].mxu0
          %v782 = vadd.f32 0.0, %v781
          %v783 = vpop.f32.mrb[0].mxu0
          %v784 = vpop.f32.mrb[0].mxu0
          %v785 = vadd.f32 0.0, %v784
          %v786 = vpop.f32.mrb[0].mxu0
          %787 = vdwg.mxu0
          %v788 = vadd.f32 %v547, %v726
          %v789 = vadd.f32 %v548, %v729
          %v790 = vadd.f32 %v549, %v734
          %v791 = vadd.f32 %v550, %v737
          %v792 = vadd.f32 %v551, %v742
          %v793 = vadd.f32 %v552, %v745
          %v794 = vadd.f32 %v553, %v750
          %v795 = vadd.f32 %v554, %v753
          %v796 = vadd.f32 %v555, %v758
          %v797 = vadd.f32 %v556, %v761
          %v798 = vadd.f32 %v557, %v766
          %v799 = vadd.f32 %v558, %v769
          %v800 = vadd.f32 %v559, %v774
          %v801 = vadd.f32 %v560, %v777
          %v802 = vadd.f32 %v561, %v782
          %v803 = vadd.f32 %v562, %v785
          %804 = vst [vmem:[#allocation2] sm:$0xff] %v788
          %805 = vst [vmem:[#allocation2 + $0x8] sm:$0xff] %v789
          %806 = vst [vmem:[#allocation2 + $0x10] sm:$0xff] %v790
          %807 = vst [vmem:[#allocation2 + $0x18] sm:$0xff] %v791
          %808 = vst [vmem:[#allocation2 + $0x20] sm:$0xff] %v792
          %809 = vst [vmem:[#allocation2 + $0x28] sm:$0xff] %v793
          %810 = vst [vmem:[#allocation2 + $0x30] sm:$0xff] %v794
          %811 = vst [vmem:[#allocation2 + $0x38] sm:$0xff] %v795
          %812 = vst [vmem:[#allocation2 + $0x40] sm:$0xff] %v796
          %813 = vst [vmem:[#allocation2 + $0x48] sm:$0xff] %v797
          %814 = vst [vmem:[#allocation2 + $0x50] sm:$0xff] %v798
          %815 = vst [vmem:[#allocation2 + $0x58] sm:$0xff] %v799
          %816 = vst [vmem:[#allocation2 + $0x60] sm:$0xff] %v800
          %817 = vst [vmem:[#allocation2 + $0x68] sm:$0xff] %v801
          %818 = vst [vmem:[#allocation2 + $0x70] sm:$0xff] %v802
          %819 = vst [vmem:[#allocation2 + $0x78] sm:$0xff] %v803
        $region85: #{graph_conv.1} parent=72 // pred_fallthru
          _
        %p820 = scmp.eq.s32.totalorder %s34, 2
        // Predicated region
        $region86: #{graph_conv.1} parent=72 // pred_check
          %p821 = pneg %p820
        $region87: #{graph_conv.1} parent=72 // pred_check_branch
          %823 = sbr.rel (%p821) target = $region89
        $region88: #{graph_conv.1} parent=72 // pred_region
          %v824 = vld [vmem:[%s510] sm:$0xff]
          %v825 = vld [vmem:[%s510 + $0x8] sm:$0xff]
          %v826 = vld [vmem:[%s510 + $0x10] sm:$0xff]
          %v827 = vld [vmem:[%s510 + $0x18] sm:$0xff]
          %v828 = vld [vmem:[%s510 + $0x20] sm:$0xff]
          %v829 = vld [vmem:[%s510 + $0x28] sm:$0xff]
          %v830 = vld [vmem:[%s510 + $0x30] sm:$0xff]
          %v831 = vld [vmem:[%s510 + $0x38] sm:$0xff]
          %v832 = vld [vmem:[%s510 + $0x40] sm:$0xff]
          %v833 = vld [vmem:[%s510 + $0x48] sm:$0xff]
          %v834 = vld [vmem:[%s510 + $0x50] sm:$0xff]
          %v835 = vld [vmem:[%s510 + $0x58] sm:$0xff]
          %v836 = vld [vmem:[%s510 + $0x60] sm:$0xff]
          %v837 = vld [vmem:[%s510 + $0x68] sm:$0xff]
          %v838 = vld [vmem:[%s510 + $0x70] sm:$0xff]
          %v839 = vld [vmem:[%s510 + $0x78] sm:$0xff]
          %v840 = vld [vmem:[#allocation2] sm:$0xff]
          %v841 = vld [vmem:[#allocation2 + $0x8] sm:$0xff]
          %v842 = vld [vmem:[#allocation2 + $0x10] sm:$0xff]
          %v843 = vld [vmem:[#allocation2 + $0x18] sm:$0xff]
          %v844 = vld [vmem:[#allocation2 + $0x20] sm:$0xff]
          %v845 = vld [vmem:[#allocation2 + $0x28] sm:$0xff]
          %v846 = vld [vmem:[#allocation2 + $0x30] sm:$0xff]
          %v847 = vld [vmem:[#allocation2 + $0x38] sm:$0xff]
          %v848 = vld [vmem:[#allocation2 + $0x40] sm:$0xff]
          %v849 = vld [vmem:[#allocation2 + $0x48] sm:$0xff]
          %v850 = vld [vmem:[#allocation2 + $0x50] sm:$0xff]
          %v851 = vld [vmem:[#allocation2 + $0x58] sm:$0xff]
          %v852 = vld [vmem:[#allocation2 + $0x60] sm:$0xff]
          %v853 = vld [vmem:[#allocation2 + $0x68] sm:$0xff]
          %v854 = vld [vmem:[#allocation2 + $0x70] sm:$0xff]
          %v855 = vld [vmem:[#allocation2 + $0x78] sm:$0xff]
          %v856 = vadd.f32 %v824, %v840
          %v857 = vadd.f32 %v825, %v841
          %v858 = vadd.f32 %v826, %v842
          %v859 = vadd.f32 %v827, %v843
          %v860 = vadd.f32 %v828, %v844
          %v861 = vadd.f32 %v829, %v845
          %v862 = vadd.f32 %v830, %v846
          %v863 = vadd.f32 %v831, %v847
          %v864 = vadd.f32 %v832, %v848
          %v865 = vadd.f32 %v833, %v849
          %v866 = vadd.f32 %v834, %v850
          %v867 = vadd.f32 %v835, %v851
          %v868 = vadd.f32 %v836, %v852
          %v869 = vadd.f32 %v837, %v853
          %v870 = vadd.f32 %v838, %v854
          %v871 = vadd.f32 %v839, %v855
          %v872 = vld [vmem:[%s467] sm:$0xff]
          %v873 = vld [vmem:[%s467 + $0x8] sm:$0xff]
          %v874 = vld [vmem:[%s467 + $0x10] sm:$0xff]
          %v875 = vld [vmem:[%s467 + $0x18] sm:$0xff]
          %v876 = vld [vmem:[%s467 + $0x20] sm:$0xff]
          %v877 = vld [vmem:[%s467 + $0x28] sm:$0xff]
          %v878 = vld [vmem:[%s467 + $0x30] sm:$0xff]
          %v879 = vld [vmem:[%s467 + $0x38] sm:$0xff]
          %v880 = vld [vmem:[%s467 + $0x40] sm:$0xff]
          %v881 = vld [vmem:[%s467 + $0x48] sm:$0xff]
          %v882 = vld [vmem:[%s467 + $0x50] sm:$0xff]
          %v883 = vld [vmem:[%s467 + $0x58] sm:$0xff]
          %v884 = vld [vmem:[%s467 + $0x60] sm:$0xff]
          %v885 = vld [vmem:[%s467 + $0x68] sm:$0xff]
          %v886 = vld [vmem:[%s467 + $0x70] sm:$0xff]
          %v887 = vld [vmem:[%s467 + $0x78] sm:$0xff]
          %889 = vset.pattern.permute.xlu0 0
          %890 = vperm.xlu0 %889, %v872
          %v891 = vpop.permute.xlu0 %890
          %894 = vset.pattern.permute.xlu0 0
          %895 = vperm.xlu0 %894, %v873
          %v896 = vpop.permute.xlu0 %895
          %899 = vset.pattern.permute.xlu0 0
          %900 = vperm.xlu0 %899, %v874
          %v901 = vpop.permute.xlu0 %900
          %904 = vset.pattern.permute.xlu0 0
          %905 = vperm.xlu0 %904, %v875
          %v906 = vpop.permute.xlu0 %905
          %909 = vset.pattern.permute.xlu0 0
          %910 = vperm.xlu0 %909, %v876
          %v911 = vpop.permute.xlu0 %910
          %914 = vset.pattern.permute.xlu0 0
          %915 = vperm.xlu0 %914, %v877
          %v916 = vpop.permute.xlu0 %915
          %919 = vset.pattern.permute.xlu0 0
          %920 = vperm.xlu0 %919, %v878
          %v921 = vpop.permute.xlu0 %920
          %924 = vset.pattern.permute.xlu0 0
          %925 = vperm.xlu0 %924, %v879
          %v926 = vpop.permute.xlu0 %925
          %929 = vset.pattern.permute.xlu0 0
          %930 = vperm.xlu0 %929, %v880
          %v931 = vpop.permute.xlu0 %930
          %934 = vset.pattern.permute.xlu0 0
          %935 = vperm.xlu0 %934, %v881
          %v936 = vpop.permute.xlu0 %935
          %939 = vset.pattern.permute.xlu0 0
          %940 = vperm.xlu0 %939, %v882
          %v941 = vpop.permute.xlu0 %940
          %944 = vset.pattern.permute.xlu0 0
          %945 = vperm.xlu0 %944, %v883
          %v946 = vpop.permute.xlu0 %945
          %949 = vset.pattern.permute.xlu0 0
          %950 = vperm.xlu0 %949, %v884
          %v951 = vpop.permute.xlu0 %950
          %954 = vset.pattern.permute.xlu0 0
          %955 = vperm.xlu0 %954, %v885
          %v956 = vpop.permute.xlu0 %955
          %959 = vset.pattern.permute.xlu0 0
          %960 = vperm.xlu0 %959, %v886
          %v961 = vpop.permute.xlu0 %960
          %964 = vset.pattern.permute.xlu0 0
          %965 = vperm.xlu0 %964, %v887
          %v966 = vpop.permute.xlu0 %965
          %v968 = vmul.f32 %v856, %v891
          %v969 = vmul.f32 %v857, %v896
          %v970 = vmul.f32 %v858, %v901
          %v971 = vmul.f32 %v859, %v906
          %v972 = vmul.f32 %v860, %v911
          %v973 = vmul.f32 %v861, %v916
          %v974 = vmul.f32 %v862, %v921
          %v975 = vmul.f32 %v863, %v926
          %v976 = vmul.f32 %v864, %v931
          %v977 = vmul.f32 %v865, %v936
          %v978 = vmul.f32 %v866, %v941
          %v979 = vmul.f32 %v867, %v946
          %v980 = vmul.f32 %v868, %v951
          %v981 = vmul.f32 %v869, %v956
          %v982 = vmul.f32 %v870, %v961
          %v983 = vmul.f32 %v871, %v966
          %984 = vst [vmem:[%s519] sm:$0xff] %v968
          %985 = vst [vmem:[%s519 + $0x8] sm:$0xff] %v969
          %986 = vst [vmem:[%s519 + $0x10] sm:$0xff] %v970
          %987 = vst [vmem:[%s519 + $0x18] sm:$0xff] %v971
          %988 = vst [vmem:[%s519 + $0x20] sm:$0xff] %v972
          %989 = vst [vmem:[%s519 + $0x28] sm:$0xff] %v973
          %990 = vst [vmem:[%s519 + $0x30] sm:$0xff] %v974
          %991 = vst [vmem:[%s519 + $0x38] sm:$0xff] %v975
          %992 = vst [vmem:[%s519 + $0x40] sm:$0xff] %v976
          %993 = vst [vmem:[%s519 + $0x48] sm:$0xff] %v977
          %994 = vst [vmem:[%s519 + $0x50] sm:$0xff] %v978
          %995 = vst [vmem:[%s519 + $0x58] sm:$0xff] %v979
          %996 = vst [vmem:[%s519 + $0x60] sm:$0xff] %v980
          %997 = vst [vmem:[%s519 + $0x68] sm:$0xff] %v981
          %998 = vst [vmem:[%s519 + $0x70] sm:$0xff] %v982
          %999 = vst [vmem:[%s519 + $0x78] sm:$0xff] %v983
        $region89: #{graph_conv.1} parent=72 // pred_fallthru
          _
        %s1000 = smul.u32 16, %s32
        %p1001 = scmp.lt.s32.totalorder %s1000, 47
        %s1002 = scalar_select %p1001, %s1000, 47
        %p1003 = scmp.lt.s32.totalorder %s33, 0
        %s1004 = scalar_select %p1003, %s33, 0
        %s1005 = sadd.s32 %s1004, %s1002
        %s1006 = smul.addr %s1005, 8
        %s1007 = scalar_lea.vmem %s6, %s1006
        // Predicated region
        $region90: #{graph_conv.1} parent=72 // pred_check
          %p1008 = pneg %p208
        $region91: #{graph_conv.1} parent=72 // pred_check_branch
          %1010 = sbr.rel (%p1008) target = $region93
        $region92: #{graph_conv.1} parent=72 // pred_region
          %s1011 = smul.u32 16, %s32
        $region93: #{graph_conv.1} parent=72 // pred_fallthru
          _
      $region73: #{graph_conv.1} parent=5 // pred_fallthru
        _
      %p1012 = scmp.le.s32.totalorder 2, %s22
      // Predicated region
      $region94: #{graph_conv.1} parent=5 // pred_check
        %p1013 = pneg %p1012
      $region95: #{graph_conv.1} parent=5 // pred_check_branch
        %1015 = sbr.rel (%p1013) target = $region97
      $region96: #{graph_conv.1} parent=5 // pred_region
        %s1016 = ssub.s32 %s22, 2
        // Predicated region
        $region98: #{graph_conv.1} parent=96 // pred_check
          %p1017 = pneg %p214
        $region99: #{graph_conv.1} parent=96 // pred_check_branch
          %1019 = sbr.rel (%p1017) target = $region101
        $region100: #{graph_conv.1} parent=96 // pred_region
          %s1020 = smul.u32 16, %s35
          %p1021 = scmp.lt.s32.totalorder %s1020, 47
          %s1022 = scalar_select %p1021, %s1020, 47
          %p1023 = scmp.lt.s32.totalorder %s36, 0
          %s1024 = scalar_select %p1023, %s36, 0
          %s1025 = sadd.s32 %s1024, %s1022
          %s1026 = smul.addr %s1025, 8
          %s1027 = scalar_lea.vmem %s6, %s1026
        $region101: #{graph_conv.1} parent=96 // pred_fallthru
          _
      $region97: #{graph_conv.1} parent=5 // pred_fallthru
        _
    $region6: #{graph_conv.1} parent=1 // loop_footer
      %s26 = sadd.s32 1, %s22
    $region7: #{graph_conv.1} parent=1 // loop_footer_branch
      %21 = sbr.rel target = $region3
    $region8: #{graph_conv.1} parent=1 // loop_exit
      _

</llo_original>
